<compile_context>
chip_gen: v5e
topology: v5e:2x2
jax: 0.10.0
libtpu: 0.0.40
codegen_flags: <defaults>
</compile_context>

<pallas_src>
import jax
import jax.numpy as jnp
from jax.experimental import pallas as pl
from jax.experimental.pallas import tpu as pltpu

IGNORE_INDEX = -1


def _round_up(x, m):
    return ((x + m - 1) // m) * m


def _fewshot_ner_kernel(logits_ref, labels_ref,            # in:  (C, tn) f32/bf16, (1, tn) i32
                        pred_ref, stats_ref,                # out: (1, tn) i32, (8, 128) f32
                        nll_acc, cnt_acc, cor_acc, fp_acc, fn_acc):  # scratch: 5 x (1, tn) f32
    i = pl.program_id(0)
    n = pl.num_programs(0)

    @pl.when(i == 0)
    def _init():
        nll_acc[...] = jnp.zeros_like(nll_acc)
        cnt_acc[...] = jnp.zeros_like(cnt_acc)
        cor_acc[...] = jnp.zeros_like(cor_acc)
        fp_acc[...] = jnp.zeros_like(fp_acc)
        fn_acc[...] = jnp.zeros_like(fn_acc)
        stats_ref[...] = jnp.zeros_like(stats_ref)

    # classes on sublanes, tokens on lanes; keep cast inside kernel (bf16-safe on v5e)
    x = logits_ref[...].astype(jnp.float32)                 # (C, tn)
    lab = labels_ref[...]                                    # (1, tn) int32
    C = x.shape[0]

    # --- log-softmax over the class (sublane) axis, numerically stable ---
    m = jnp.max(x, axis=0, keepdims=True)                    # (1, tn)
    shifted = x - m
    lse = jnp.log(jnp.sum(jnp.exp(shifted), axis=0, keepdims=True))    # (1, tn)

    # --- gather shifted logit of the target class via one-hot over classes ---
    row = jax.lax.broadcasted_iota(jnp.int32, x.shape, 0)    # (C, tn)
    onehot = row == lab                                       # ignore_index (-1) matches nothing
    tgt_shifted = jnp.sum(jnp.where(onehot, shifted, 0.0), axis=0, keepdims=True)  # (1, tn)

    valid = lab != IGNORE_INDEX                               # (1, tn) bool
    nll = jnp.where(valid, lse - tgt_shifted, 0.0)            # masked per-token NLL

    # --- prediction: reuse row max m; first (lowest) class index attaining it ---
    pred = jnp.min(jnp.where(x == m, row, C), axis=0, keepdims=True).astype(jnp.int32)
    pred_ref[...] = pred                                      # lane-dense store

    correct = jnp.where(valid & (pred == lab), 1.0, 0.0)
    fp = jnp.where(valid & (pred > 0) & (lab == 0), 1.0, 0.0)
    fn = jnp.where(valid & (pred == 0) & (lab > 0), 1.0, 0.0)

    # --- per-token (lane-wise) accumulation only; no per-step cross-lane reduce ---
    nll_acc[...] += nll
    cnt_acc[...] += valid.astype(jnp.float32)
    cor_acc[...] += correct
    fp_acc[...] += fp
    fn_acc[...] += fn

    @pl.when(i == n - 1)
    def _finalize():
        # single cross-lane reduction per metric, once per call; lane-dense writeback
        stats_ref[0:1, :] = jnp.broadcast_to(
            jnp.sum(nll_acc[...], axis=1, keepdims=True), (1, 128))
        stats_ref[1:2, :] = jnp.broadcast_to(
            jnp.sum(cnt_acc[...], axis=1, keepdims=True), (1, 128))
        stats_ref[2:3, :] = jnp.broadcast_to(
            jnp.sum(cor_acc[...], axis=1, keepdims=True), (1, 128))
        stats_ref[3:4, :] = jnp.broadcast_to(
            jnp.sum(fp_acc[...], axis=1, keepdims=True), (1, 128))
        stats_ref[4:5, :] = jnp.broadcast_to(
            jnp.sum(fn_acc[...], axis=1, keepdims=True), (1, 128))


def fewshot_ner_metrics(logits, labels, *, max_tile=8192):
    """logits: (T, C) float, labels: (T,) int (ignore_index = -1).

    Returns dict with: loss (CE mean over valid tokens), accuracy, pred (T,) int32,
    fp / fn token counts (error_analysis), valid token count.
    """
    T, C = logits.shape

    # Pick the largest lane tile (multiple of 128) that covers T; pad ragged tails
    # with IGNORE_INDEX labels (safe: the valid mask excludes them).
    if T <= max_tile:
        tn = _round_up(max(T, 1), 128)
        t_pad = tn
    else:
        tn = max_tile
        t_pad = _round_up(T, tn)

    # Lane-dense relayout: classes on sublanes, tokens on lanes.
    logits_t = jnp.transpose(logits, (1, 0))                  # (C, T)
    labels_i = labels.reshape(-1).astype(jnp.int32)
    if t_pad != T:
        logits_t = jnp.pad(logits_t, ((0, 0), (0, t_pad - T)))
        labels_i = jnp.pad(labels_i, (0, t_pad - T), constant_values=IGNORE_INDEX)
    labels2d = labels_i.reshape(1, t_pad)

    grid_spec = pltpu.PrefetchScalarGridSpec(
        num_scalar_prefetch=0,
        grid=(t_pad // tn,),
        in_specs=[
            pl.BlockSpec((C, tn), lambda i: (0, i)),          # logits (C, tn)
            pl.BlockSpec((1, tn), lambda i: (0, i)),          # labels (1, tn)
        ],
        out_specs=[
            pl.BlockSpec((1, tn), lambda i: (0, i)),          # pred   (1, tn)
            pl.BlockSpec((8, 128), lambda i: (0, 0)),         # stats slab (resident)
        ],
        scratch_shapes=[pltpu.VMEM((1, tn), jnp.float32)] * 5,
    )

    pred2d, stats = pl.pallas_call(
        _fewshot_ner_kernel,
        out_shape=(
            jax.ShapeDtypeStruct((1, t_pad), jnp.int32),
            jax.ShapeDtypeStruct((8, 128), jnp.float32),
        ),
        grid_spec=grid_spec,
        compiler_params=pltpu.CompilerParams(
            dimension_semantics=("arbitrary",)),              # accumulators carried across grid
    )(logits_t, labels2d)

    nll_sum = stats[0, 0]
    cnt = stats[1, 0]
    corr = stats[2, 0]
    fp = stats[3, 0]
    fn = stats[4, 0]
    # Guard against an all-ignored batch (torch CE would produce NaN there).
    denom = jnp.maximum(cnt, 1.0)
    return {
        "loss": nll_sum / denom,        # CrossEntropyLoss(ignore_index=-1), mean reduction
        "accuracy": corr / denom,       # FewShotNERModel.accuracy semantics
        "pred": pred2d[0, :T],
        "fp": fp,                       # token-level false positives (error_analysis)
        "fn": fn,                       # token-level false negatives (error_analysis)
        "valid_count": cnt,
    }


# TODO(synk): FewShotNERModel.forward raises NotImplementedError (the concrete
# proto/NNShot subclass defines it) and `my_word_encoder` is external, so no
# encoder forward is synthesized here.
# TODO(synk): span-level / string-tag metrics (__get_class_span_dict__ etc.) are
# Python dict+string bookkeeping with no tensor/Pallas equivalent.
# TODO(synk): v7x 2-TC split of the token range (per-core partial stats) not
# implemented; at these sizes the whole reduction is a single grid step.


def _reference(logits, labels):
    """Pure-JAX reference (mirrors torch CE ignore_index + accuracy + fp/fn)."""
    valid = labels != IGNORE_INDEX
    logp = jax.nn.log_softmax(logits, axis=-1)
    safe_lab = jnp.where(valid, labels, 0)
    tok_nll = -jnp.take_along_axis(logp, safe_lab[:, None], axis=-1)[:, 0]
    cnt = jnp.sum(valid)
    loss = jnp.sum(jnp.where(valid, tok_nll, 0.0)) / cnt
    pred = jnp.argmax(logits, axis=-1).astype(jnp.int32)
    acc = jnp.sum(jnp.where(valid, (pred == labels).astype(jnp.float32), 0.0)) / cnt
    fp = jnp.sum(jnp.where(valid & (pred > 0) & (labels == 0), 1.0, 0.0))
    fn = jnp.sum(jnp.where(valid & (pred == 0) & (labels > 0), 1.0, 0.0))
    return loss, acc, pred, fp, fn


def _run_case(key, T, C):
    k_logits, k_labels, k_ignore = jax.random.split(key, 3)
    logits = jax.random.normal(k_logits, (T, C), dtype=jnp.float32)
    labels = jax.random.randint(k_labels, (T,), 0, C, dtype=jnp.int32)
    ignore_mask = jax.random.bernoulli(k_ignore, 0.2, (T,))
    labels = jnp.where(ignore_mask, jnp.int32(IGNORE_INDEX), labels)

    out = fewshot_ner_metrics(logits, labels)
    jax.block_until_ready(out)

    ref_loss, ref_acc, ref_pred, ref_fp, ref_fn = _reference(logits, labels)
    assert jnp.allclose(out["loss"], ref_loss, rtol=1e-5, atol=1e-5)
    assert jnp.allclose(out["accuracy"], ref_acc, rtol=1e-5, atol=1e-5)
    assert bool(jnp.all(out["pred"] == ref_pred))
    assert jnp.allclose(out["fp"], ref_fp)
    assert jnp.allclose(out["fn"], ref_fn)


if __name__ == "__main__":
    # Few-shot NER-ish shapes: N=7 entity classes + "O" -> C=8; N*Q sentences * seq_len
    # flattened -> T tokens. Second case exercises ragged T / padding path.
    key = jax.random.PRNGKey(0)
    k1, k2 = jax.random.split(key)
    _run_case(k1, T=64, C=8)
    _run_case(k2, T=300, C=5)
    print("KERNEL_OK")
</pallas_src>

<mosaic_0001>
module attributes {stable_mosaic.version = 11 : i64} {
  func.func @_fewshot_ner_kernel(%arg0: i32, %arg1: memref<8x128xf32, #tpu.memory_space<vmem>>, %arg2: memref<1x128xi32, #tpu.memory_space<vmem>>, %arg3: memref<1x128xi32, #tpu.memory_space<vmem>>, %arg4: memref<8x128xf32, #tpu.memory_space<vmem>>, %arg5: memref<1x128xf32, #tpu.memory_space<vmem>>, %arg6: memref<1x128xf32, #tpu.memory_space<vmem>>, %arg7: memref<1x128xf32, #tpu.memory_space<vmem>>, %arg8: memref<1x128xf32, #tpu.memory_space<vmem>>, %arg9: memref<1x128xf32, #tpu.memory_space<vmem>>) attributes {dimension_semantics = [#tpu.dimension_semantics<arbitrary>], iteration_bounds = array<i64: 1>, scalar_prefetch = 0 : i64, scratch_operands = 5 : i64, tpu.core_type = #tpu.core_type<tc>, window_params = [{transform_indices = @transform_0, window_bounds = array<i64: 8, 128>}, {transform_indices = @transform_1, window_bounds = array<i64: 1, 128>}, {transform_indices = @transform_2, window_bounds = array<i64: 1, 128>}, {pipeline_mode = #tpu.pipeline_mode<synchronous>, transform_indices = @transform_3, window_bounds = array<i64: 8, 128>}]} {
    %c0_i32 = arith.constant 0 : i32
    %0 = arith.cmpi eq, %arg0, %c0_i32 : i32
    %1 = arith.extui %0 : i1 to i32
    %c0_i32_0 = arith.constant 0 : i32
    %2 = arith.cmpi ne, %1, %c0_i32_0 : i32
    scf.if %2 {
      %cst_43 = arith.constant 0.000000e+00 : f32
      %75 = vector.broadcast %cst_43 : f32 to vector<1x128xf32>
      %c0_44 = arith.constant 0 : index
      %c0_45 = arith.constant 0 : index
      %76 = vector.load %arg5[%c0_44, %c0_45] : memref<1x128xf32, #tpu.memory_space<vmem>>, vector<1x128xf32>
      tpu.vector_store %arg5[%c0_44, %c0_45], %75 {strides = array<i32>} : memref<1x128xf32, #tpu.memory_space<vmem>>, vector<1x128xf32>,
      %cst_46 = arith.constant 0.000000e+00 : f32
      %77 = vector.broadcast %cst_46 : f32 to vector<1x128xf32>
      %c0_47 = arith.constant 0 : index
      %c0_48 = arith.constant 0 : index
      %78 = vector.load %arg6[%c0_47, %c0_48] : memref<1x128xf32, #tpu.memory_space<vmem>>, vector<1x128xf32>
      tpu.vector_store %arg6[%c0_47, %c0_48], %77 {strides = array<i32>} : memref<1x128xf32, #tpu.memory_space<vmem>>, vector<1x128xf32>,
      %cst_49 = arith.constant 0.000000e+00 : f32
      %79 = vector.broadcast %cst_49 : f32 to vector<1x128xf32>
      %c0_50 = arith.constant 0 : index
      %c0_51 = arith.constant 0 : index
      %80 = vector.load %arg7[%c0_50, %c0_51] : memref<1x128xf32, #tpu.memory_space<vmem>>, vector<1x128xf32>
      tpu.vector_store %arg7[%c0_50, %c0_51], %79 {strides = array<i32>} : memref<1x128xf32, #tpu.memory_space<vmem>>, vector<1x128xf32>,
      %cst_52 = arith.constant 0.000000e+00 : f32
      %81 = vector.broadcast %cst_52 : f32 to vector<1x128xf32>
      %c0_53 = arith.constant 0 : index
      %c0_54 = arith.constant 0 : index
      %82 = vector.load %arg8[%c0_53, %c0_54] : memref<1x128xf32, #tpu.memory_space<vmem>>, vector<1x128xf32>
      tpu.vector_store %arg8[%c0_53, %c0_54], %81 {strides = array<i32>} : memref<1x128xf32, #tpu.memory_space<vmem>>, vector<1x128xf32>,
      %cst_55 = arith.constant 0.000000e+00 : f32
      %83 = vector.broadcast %cst_55 : f32 to vector<1x128xf32>
      %c0_56 = arith.constant 0 : index
      %c0_57 = arith.constant 0 : index
      %84 = vector.load %arg9[%c0_56, %c0_57] : memref<1x128xf32, #tpu.memory_space<vmem>>, vector<1x128xf32>
      tpu.vector_store %arg9[%c0_56, %c0_57], %83 {strides = array<i32>} : memref<1x128xf32, #tpu.memory_space<vmem>>, vector<1x128xf32>,
      %cst_58 = arith.constant 0.000000e+00 : f32
      %85 = vector.broadcast %cst_58 : f32 to vector<8x128xf32>
      %c0_59 = arith.constant 0 : index
      %c0_60 = arith.constant 0 : index
      %86 = vector.load %arg4[%c0_59, %c0_60] : memref<8x128xf32, #tpu.memory_space<vmem>>, vector<8x128xf32>
      tpu.vector_store %arg4[%c0_59, %c0_60], %85 {strides = array<i32>} : memref<8x128xf32, #tpu.memory_space<vmem>>, vector<8x128xf32>,
    } else {
    }
    %c0 = arith.constant 0 : index
    %c0_1 = arith.constant 0 : index
    %3 = vector.load %arg1[%c0, %c0_1] : memref<8x128xf32, #tpu.memory_space<vmem>>, vector<8x128xf32>
    %c0_2 = arith.constant 0 : index
    %c0_3 = arith.constant 0 : index
    %4 = vector.load %arg2[%c0_2, %c0_3] : memref<1x128xi32, #tpu.memory_space<vmem>>, vector<1x128xi32>
    %cst = arith.constant dense<0xFF800000> : vector<128xf32>
    %5 = vector.multi_reduction <maximumf>, %3, %cst [0] : vector<8x128xf32> to vector<128xf32>
    %6 = vector.shape_cast %5 : vector<128xf32> to vector<1x128xf32>
    %7 = vector.broadcast %6 : vector<1x128xf32> to vector<8x128xf32>
    %8 = arith.subf %3, %7 : vector<8x128xf32>
    %9 = math.exp %8 : vector<8x128xf32>
    %cst_4 = arith.constant dense<0.000000e+00> : vector<128xf32>
    %10 = vector.multi_reduction <add>, %9, %cst_4 [0] : vector<8x128xf32> to vector<128xf32>
    %11 = vector.shape_cast %10 : vector<128xf32> to vector<1x128xf32>
    %12 = math.log %11 : vector<1x128xf32>
    %13 = tpu.iota {dimensions = array<i32: 0>} : vector<8x128xi32>
    %14 = vector.broadcast %4 : vector<1x128xi32> to vector<8x128xi32>
    %15 = arith.cmpi eq, %13, %14 : vector<8x128xi32>
    %cst_5 = arith.constant 0.000000e+00 : f32
    %16 = vector.broadcast %cst_5 : f32 to vector<8x128xf32>
    %17 = arith.select %15, %8, %16 : vector<8x128xi1>, vector<8x128xf32>
    %cst_6 = arith.constant dense<0.000000e+00> : vector<128xf32>
    %18 = vector.multi_reduction <add>, %17, %cst_6 [0] : vector<8x128xf32> to vector<128xf32>
    %19 = vector.shape_cast %18 : vector<128xf32> to vector<1x128xf32>
    %c-1_i32 = arith.constant -1 : i32
    %20 = vector.broadcast %c-1_i32 : i32 to vector<1x128xi32>
    %21 = arith.cmpi ne, %4, %20 : vector<1x128xi32>
    %22 = arith.subf %12, %19 : vector<1x128xf32>
    %cst_7 = arith.constant 0.000000e+00 : f32
    %23 = vector.broadcast %cst_7 : f32 to vector<1x128xf32>
    %24 = arith.select %21, %22, %23 : vector<1x128xi1>, vector<1x128xf32>
    %25 = vector.broadcast %6 : vector<1x128xf32> to vector<8x128xf32>
    %26 = arith.cmpf oeq, %3, %25 : vector<8x128xf32>
    %c8_i32 = arith.constant 8 : i32
    %27 = vector.broadcast %c8_i32 : i32 to vector<8x128xi32>
    %28 = arith.select %26, %13, %27 : vector<8x128xi1>, vector<8x128xi32>
    %cst_8 = arith.constant dense<2147483647> : vector<128xi32>
    %29 = vector.multi_reduction <minsi>, %28, %cst_8 [0] : vector<8x128xi32> to vector<128xi32>
    %30 = vector.shape_cast %29 : vector<128xi32> to vector<1x128xi32>
    %c0_9 = arith.constant 0 : index
    %c0_10 = arith.constant 0 : index
    %31 = vector.load %arg3[%c0_9, %c0_10] : memref<1x128xi32, #tpu.memory_space<vmem>>, vector<1x128xi32>
    tpu.vector_store %arg3[%c0_9, %c0_10], %30 {strides = array<i32>} : memref<1x128xi32, #tpu.memory_space<vmem>>, vector<1x128xi32>,
    %32 = arith.cmpi eq, %30, %4 : vector<1x128xi32>
    %33 = arith.andi %21, %32 : vector<1x128xi1>
    %cst_11 = arith.constant 1.000000e+00 : f32
    %cst_12 = arith.constant 0.000000e+00 : f32
    %34 = vector.broadcast %cst_11 : f32 to vector<1x128xf32>
    %35 = vector.broadcast %cst_12 : f32 to vector<1x128xf32>
    %36 = arith.select %33, %34, %35 : vector<1x128xi1>, vector<1x128xf32>
    %c0_i32_13 = arith.constant 0 : i32
    %37 = vector.broadcast %c0_i32_13 : i32 to vector<1x128xi32>
    %38 = arith.cmpi sgt, %30, %37 : vector<1x128xi32>
    %39 = arith.andi %21, %38 : vector<1x128xi1>
    %c0_i32_14 = arith.constant 0 : i32
    %40 = vector.broadcast %c0_i32_14 : i32 to vector<1x128xi32>
    %41 = arith.cmpi eq, %4, %40 : vector<1x128xi32>
    %42 = arith.andi %39, %41 : vector<1x128xi1>
    %cst_15 = arith.constant 1.000000e+00 : f32
    %cst_16 = arith.constant 0.000000e+00 : f32
    %43 = vector.broadcast %cst_15 : f32 to vector<1x128xf32>
    %44 = vector.broadcast %cst_16 : f32 to vector<1x128xf32>
    %45 = arith.select %42, %43, %44 : vector<1x128xi1>, vector<1x128xf32>
    %c0_i32_17 = arith.constant 0 : i32
    %46 = vector.broadcast %c0_i32_17 : i32 to vector<1x128xi32>
    %47 = arith.cmpi eq, %30, %46 : vector<1x128xi32>
    %48 = arith.andi %21, %47 : vector<1x128xi1>
    %c0_i32_18 = arith.constant 0 : i32
    %49 = vector.broadcast %c0_i32_18 : i32 to vector<1x128xi32>
    %50 = arith.cmpi sgt, %4, %49 : vector<1x128xi32>
    %51 = arith.andi %48, %50 : vector<1x128xi1>
    %cst_19 = arith.constant 1.000000e+00 : f32
    %cst_20 = arith.constant 0.000000e+00 : f32
    %52 = vector.broadcast %cst_19 : f32 to vector<1x128xf32>
    %53 = vector.broadcast %cst_20 : f32 to vector<1x128xf32>
    %54 = arith.select %51, %52, %53 : vector<1x128xi1>, vector<1x128xf32>
    %c0_21 = arith.constant 0 : index
    %c0_22 = arith.constant 0 : index
    %55 = vector.load %arg5[%c0_21, %c0_22] : memref<1x128xf32, #tpu.memory_space<vmem>>, vector<1x128xf32>
    %56 = arith.addf %55, %24 : vector<1x128xf32>
    %c0_23 = arith.constant 0 : index
    %c0_24 = arith.constant 0 : index
    %57 = vector.load %arg5[%c0_23, %c0_24] : memref<1x128xf32, #tpu.memory_space<vmem>>, vector<1x128xf32>
    tpu.vector_store %arg5[%c0_23, %c0_24], %56 {strides = array<i32>} : memref<1x128xf32, #tpu.memory_space<vmem>>, vector<1x128xf32>,
    %c0_25 = arith.constant 0 : index
    %c0_26 = arith.constant 0 : index
    %58 = vector.load %arg6[%c0_25, %c0_26] : memref<1x128xf32, #tpu.memory_space<vmem>>, vector<1x128xf32>
    %59 = arith.extui %21 : vector<1x128xi1> to vector<1x128xi32>
    %60 = arith.sitofp %59 : vector<1x128xi32> to vector<1x128xf32>
    %61 = arith.addf %58, %60 : vector<1x128xf32>
    %c0_27 = arith.constant 0 : index
    %c0_28 = arith.constant 0 : index
    %62 = vector.load %arg6[%c0_27, %c0_28] : memref<1x128xf32, #tpu.memory_space<vmem>>, vector<1x128xf32>
    tpu.vector_store %arg6[%c0_27, %c0_28], %61 {strides = array<i32>} : memref<1x128xf32, #tpu.memory_space<vmem>>, vector<1x128xf32>,
    %c0_29 = arith.constant 0 : index
    %c0_30 = arith.constant 0 : index
    %63 = vector.load %arg7[%c0_29, %c0_30] : memref<1x128xf32, #tpu.memory_space<vmem>>, vector<1x128xf32>
    %64 = arith.addf %63, %36 : vector<1x128xf32>
    %c0_31 = arith.constant 0 : index
    %c0_32 = arith.constant 0 : index
    %65 = vector.load %arg7[%c0_31, %c0_32] : memref<1x128xf32, #tpu.memory_space<vmem>>, vector<1x128xf32>
    tpu.vector_store %arg7[%c0_31, %c0_32], %64 {strides = array<i32>} : memref<1x128xf32, #tpu.memory_space<vmem>>, vector<1x128xf32>,
    %c0_33 = arith.constant 0 : index
    %c0_34 = arith.constant 0 : index
    %66 = vector.load %arg8[%c0_33, %c0_34] : memref<1x128xf32, #tpu.memory_space<vmem>>, vector<1x128xf32>
    %67 = arith.addf %66, %45 : vector<1x128xf32>
    %c0_35 = arith.constant 0 : index
    %c0_36 = arith.constant 0 : index
    %68 = vector.load %arg8[%c0_35, %c0_36] : memref<1x128xf32, #tpu.memory_space<vmem>>, vector<1x128xf32>
    tpu.vector_store %arg8[%c0_35, %c0_36], %67 {strides = array<i32>} : memref<1x128xf32, #tpu.memory_space<vmem>>, vector<1x128xf32>,
    %c0_37 = arith.constant 0 : index
    %c0_38 = arith.constant 0 : index
    %69 = vector.load %arg9[%c0_37, %c0_38] : memref<1x128xf32, #tpu.memory_space<vmem>>, vector<1x128xf32>
    %70 = arith.addf %69, %54 : vector<1x128xf32>
    %c0_39 = arith.constant 0 : index
    %c0_40 = arith.constant 0 : index
    %71 = vector.load %arg9[%c0_39, %c0_40] : memref<1x128xf32, #tpu.memory_space<vmem>>, vector<1x128xf32>
    tpu.vector_store %arg9[%c0_39, %c0_40], %70 {strides = array<i32>} : memref<1x128xf32, #tpu.memory_space<vmem>>, vector<1x128xf32>,
    %c0_i32_41 = arith.constant 0 : i32
    %72 = arith.cmpi eq, %arg0, %c0_i32_41 : i32
    %73 = arith.extui %72 : i1 to i32
    %c0_i32_42 = arith.constant 0 : i32
    %74 = arith.cmpi ne, %73, %c0_i32_42 : i32
    scf.if %74 {
      %c0_43 = arith.constant 0 : index
      %c0_44 = arith.constant 0 : index
      %75 = vector.load %arg5[%c0_43, %c0_44] : memref<1x128xf32, #tpu.memory_space<vmem>>, vector<1x128xf32>
      %cst_45 = arith.constant dense<0.000000e+00> : vector<1xf32>
      %76 = vector.multi_reduction <add>, %75, %cst_45 [1] : vector<1x128xf32> to vector<1xf32>
      %77 = vector.shape_cast %76 : vector<1xf32> to vector<1x1xf32>
      %78 = vector.shape_cast %77 : vector<1x1xf32> to vector<1x1xf32>
      %79 = vector.broadcast %78 : vector<1x1xf32> to vector<1x128xf32>
      %c0_46 = arith.constant 0 : index
      %c0_47 = arith.constant 0 : index
      %80 = vector.load %arg4[%c0_46, %c0_47] : memref<8x128xf32, #tpu.memory_space<vmem>>, vector<1x128xf32>
      tpu.vector_store %arg4[%c0_46, %c0_47], %79 {strides = array<i32>} : memref<8x128xf32, #tpu.memory_space<vmem>>, vector<1x128xf32>,
      %c0_48 = arith.constant 0 : index
      %c0_49 = arith.constant 0 : index
      %81 = vector.load %arg6[%c0_48, %c0_49] : memref<1x128xf32, #tpu.memory_space<vmem>>, vector<1x128xf32>
      %cst_50 = arith.constant dense<0.000000e+00> : vector<1xf32>
      %82 = vector.multi_reduction <add>, %81, %cst_50 [1] : vector<1x128xf32> to vector<1xf32>
      %83 = vector.shape_cast %82 : vector<1xf32> to vector<1x1xf32>
      %84 = vector.shape_cast %83 : vector<1x1xf32> to vector<1x1xf32>
      %85 = vector.broadcast %84 : vector<1x1xf32> to vector<1x128xf32>
      %c1 = arith.constant 1 : index
      %c0_51 = arith.constant 0 : index
      %86 = vector.load %arg4[%c1, %c0_51] : memref<8x128xf32, #tpu.memory_space<vmem>>, vector<1x128xf32>
      tpu.vector_store %arg4[%c1, %c0_51], %85 {strides = array<i32>} : memref<8x128xf32, #tpu.memory_space<vmem>>, vector<1x128xf32>,
      %c0_52 = arith.constant 0 : index
      %c0_53 = arith.constant 0 : index
      %87 = vector.load %arg7[%c0_52, %c0_53] : memref<1x128xf32, #tpu.memory_space<vmem>>, vector<1x128xf32>
      %cst_54 = arith.constant dense<0.000000e+00> : vector<1xf32>
      %88 = vector.multi_reduction <add>, %87, %cst_54 [1] : vector<1x128xf32> to vector<1xf32>
      %89 = vector.shape_cast %88 : vector<1xf32> to vector<1x1xf32>
      %90 = vector.shape_cast %89 : vector<1x1xf32> to vector<1x1xf32>
      %91 = vector.broadcast %90 : vector<1x1xf32> to vector<1x128xf32>
      %c2 = arith.constant 2 : index
      %c0_55 = arith.constant 0 : index
      %92 = vector.load %arg4[%c2, %c0_55] : memref<8x128xf32, #tpu.memory_space<vmem>>, vector<1x128xf32>
      tpu.vector_store %arg4[%c2, %c0_55], %91 {strides = array<i32>} : memref<8x128xf32, #tpu.memory_space<vmem>>, vector<1x128xf32>,
      %c0_56 = arith.constant 0 : index
      %c0_57 = arith.constant 0 : index
      %93 = vector.load %arg8[%c0_56, %c0_57] : memref<1x128xf32, #tpu.memory_space<vmem>>, vector<1x128xf32>
      %cst_58 = arith.constant dense<0.000000e+00> : vector<1xf32>
      %94 = vector.multi_reduction <add>, %93, %cst_58 [1] : vector<1x128xf32> to vector<1xf32>
      %95 = vector.shape_cast %94 : vector<1xf32> to vector<1x1xf32>
      %96 = vector.shape_cast %95 : vector<1x1xf32> to vector<1x1xf32>
      %97 = vector.broadcast %96 : vector<1x1xf32> to vector<1x128xf32>
      %c3 = arith.constant 3 : index
      %c0_59 = arith.constant 0 : index
      %98 = vector.load %arg4[%c3, %c0_59] : memref<8x128xf32, #tpu.memory_space<vmem>>, vector<1x128xf32>
      tpu.vector_store %arg4[%c3, %c0_59], %97 {strides = array<i32>} : memref<8x128xf32, #tpu.memory_space<vmem>>, vector<1x128xf32>,
      %c0_60 = arith.constant 0 : index
      %c0_61 = arith.constant 0 : index
      %99 = vector.load %arg9[%c0_60, %c0_61] : memref<1x128xf32, #tpu.memory_space<vmem>>, vector<1x128xf32>
      %cst_62 = arith.constant dense<0.000000e+00> : vector<1xf32>
      %100 = vector.multi_reduction <add>, %99, %cst_62 [1] : vector<1x128xf32> to vector<1xf32>
      %101 = vector.shape_cast %100 : vector<1xf32> to vector<1x1xf32>
      %102 = vector.shape_cast %101 : vector<1x1xf32> to vector<1x1xf32>
      %103 = vector.broadcast %102 : vector<1x1xf32> to vector<1x128xf32>
      %c4 = arith.constant 4 : index
      %c0_63 = arith.constant 0 : index
      %104 = vector.load %arg4[%c4, %c0_63] : memref<8x128xf32, #tpu.memory_space<vmem>>, vector<1x128xf32>
      tpu.vector_store %arg4[%c4, %c0_63], %103 {strides = array<i32>} : memref<8x128xf32, #tpu.memory_space<vmem>>, vector<1x128xf32>,
    } else {
    }
    return
  }
  func.func @transform_0(%arg0: i32) -> (i32, i32) {
    %c0_i32 = arith.constant 0 : i32
    %c0_i32_0 = arith.constant 0 : i32
    return %c0_i32, %arg0 : i32, i32
  }
  func.func @transform_1(%arg0: i32) -> (i32, i32) {
    %c0_i32 = arith.constant 0 : i32
    %c0_i32_0 = arith.constant 0 : i32
    return %c0_i32, %arg0 : i32, i32
  }
  func.func @transform_2(%arg0: i32) -> (i32, i32) {
    %c0_i32 = arith.constant 0 : i32
    %c0_i32_0 = arith.constant 0 : i32
    return %c0_i32, %arg0 : i32, i32
  }
  func.func @transform_3(%arg0: i32) -> (i32, i32) {
    %c0_i32 = arith.constant 0 : i32
    %c0_i32_0 = arith.constant 0 : i32
    %c0_i32_1 = arith.constant 0 : i32
    return %c0_i32, %c0_i32_0 : i32, i32
  }
}

</mosaic_0001>

<llo_original>
// kernel: tpu_custom_call.1
$region0: #{tpu_custom_call.1}
  #allocation0 [shape = 'u32[]', space=smem, size = 0x4, offset = 0x4, fixed_abs, tag = 'smem constant byte address 0x4 - core index']
  #allocation1 [shape = 'u32[72,128]{1,0:T(1,128)}', space=vmem, size = 0x9000, scoped, tag = 'internal scratch']
  #allocation2 [shape = 'f32[1,128]{1,0:T(1,128)}', space=vmem, size = 0x200, scoped, tag = 'scratch operand']
  #allocation3 [shape = 'f32[1,128]{1,0:T(1,128)}', space=vmem, size = 0x200, scoped, tag = 'scratch operand']
  #allocation4 [shape = 'f32[1,128]{1,0:T(1,128)}', space=vmem, size = 0x200, scoped, tag = 'scratch operand']
  #allocation5 [shape = 'f32[1,128]{1,0:T(1,128)}', space=vmem, size = 0x200, scoped, tag = 'scratch operand']
  #allocation6 [shape = 'f32[1,128]{1,0:T(1,128)}', space=vmem, size = 0x200, scoped, tag = 'scratch operand']
  %s0 = inlined_call_operand.hbm [shape: f32[8,128], index: 0, kind: input, shape index: {}]
  %s1 = inlined_call_operand.hbm [shape: s32[1,128], index: 1, kind: input, shape index: {}]
  %s2 = inlined_call_operand.hbm [shape: s32[1,128], index: 2, kind: output, shape index: {0}]
  %s3 = inlined_call_operand.hbm [shape: f32[8,128], index: 3, kind: output, shape index: {1}]
  %4 = xla_tuple %s2, %s3
  %s5 = sld [smem:[#allocation0]]
  $region42: #{tpu_custom_call.1} parent=0
    _
  %s7 = ssub.s32 1, %s5
  %s8 = scalar_select 0, %s7, %s5
  $region1: #{tpu_custom_call.1} parent=0
    #allocation7 [shape = 'u8[4096]{0}', space=vmem, size = 0x1000, scoped, tag = 'input window, operand 0, single buffered']
    #allocation8 [shape = 's32[1]{0}', space=sflag, size = 0x4, scoped, tag = 'scoped memory for tpu_custom_call.1']
    #allocation9 [shape = 's32[1]{0}', space=sflag, size = 0x4, scoped, tag = 'scoped memory for tpu_custom_call.1']
    #allocation10 [shape = 'u8[512]{0}', space=vmem, size = 0x400, scoped, tag = 'input window, operand 1, single buffered']
    #allocation11 [shape = 's32[1]{0}', space=sflag, size = 0x4, scoped, tag = 'scoped memory for tpu_custom_call.1']
    #allocation12 [shape = 'u8[512]{0}', space=vmem, size = 0x400, scoped, tag = 'output window, operand 0, single buffered']
    #allocation13 [shape = 'u8[4096]{0}', space=vmem, size = 0x1000, scoped, tag = 'output window, operand 1, single buffered']
    #allocation14 [shape = 's32[1]{0}', space=sflag, size = 0x4, scoped, tag = 'scoped memory for tpu_custom_call.1']
    %9 = vsyncpa [#allocation8], 0
    %10 = vsyncpa [#allocation11], 0
    %11 = vsyncpa [#allocation9], 0
    %12 = vsyncpa [#allocation14], 0
    // Predicated region
    $region2: #{tpu_custom_call.1} parent=1 // pred_check
      _
    $region3: #{tpu_custom_call.1} parent=1 // pred_check_branch
      %14 = sbr.rel (0) target = $region5
    $region4: #{tpu_custom_call.1} parent=1 // pred_region
      %16 = vsyncadd [#allocation8], 0
      %s18 = sshll.u32 %s0, 4
      %s19 = int_to_ptr.hbm [resolvable:$true] %s18
      %s20 = sshll.u32 [#allocation7], 4
      %s21 = int_to_ptr.vmem [resolvable:$true] %s20
      %23 = dma.hbm_to_vmem [thread:$0]  %s19, 128, %s21, [#allocation8]
    $region5: #{tpu_custom_call.1} parent=1 // pred_fallthru
      _
    // Predicated region
    $region6: #{tpu_custom_call.1} parent=1 // pred_check
      _
    $region7: #{tpu_custom_call.1} parent=1 // pred_check_branch
      %25 = sbr.rel (0) target = $region9
    $region8: #{tpu_custom_call.1} parent=1 // pred_region
      %27 = vsyncadd [#allocation11], 0
      %s29 = sshll.u32 %s1, 4
      %s30 = int_to_ptr.hbm [resolvable:$true] %s29
      %s31 = sshll.u32 [#allocation10], 4
      %s32 = int_to_ptr.vmem [resolvable:$true] %s31
      %34 = dma.hbm_to_vmem [thread:$0]  %s30, 16, %s32, [#allocation11]
    $region9: #{tpu_custom_call.1} parent=1 // pred_fallthru
      _
    // Predicated region
    $region10: #{tpu_custom_call.1} parent=1 // pred_check
      _
    $region11: #{tpu_custom_call.1} parent=1 // pred_check_branch
      %36 = sbr.rel (0) target = $region13
    $region12: #{tpu_custom_call.1} parent=1 // pred_region
      %38 = dma.done [#allocation8], 128
    $region13: #{tpu_custom_call.1} parent=1 // pred_fallthru
      _
    // Predicated region
    $region14: #{tpu_custom_call.1} parent=1 // pred_check
      _
    $region15: #{tpu_custom_call.1} parent=1 // pred_check_branch
      %40 = sbr.rel (0) target = $region17
    $region16: #{tpu_custom_call.1} parent=1 // pred_region
      %42 = dma.done [#allocation11], 16
    $region17: #{tpu_custom_call.1} parent=1 // pred_fallthru
      _
    %p43 = scmp.eq.s32.totalorder 0, 0
    // Predicated region
    $region18: #{tpu_custom_call.1} parent=1 // pred_check
      %p44 = pneg %p43
    $region19: #{tpu_custom_call.1} parent=1 // pred_check_branch
      %46 = sbr.rel (%p44) target = $region21
    $region20: #{tpu_custom_call.1} parent=1 // pred_region
      %47 = vst [vmem:[#allocation2] sm:$0x1] 0.0
      %48 = vst [vmem:[#allocation3] sm:$0x1] 0.0
      %49 = vst [vmem:[#allocation4] sm:$0x1] 0.0
      %50 = vst [vmem:[#allocation5] sm:$0x1] 0.0
      %51 = vst [vmem:[#allocation6] sm:$0x1] 0.0
      %52 = vst [vmem:[#allocation13] sm:$0xff] 0.0
    $region21: #{tpu_custom_call.1} parent=1 // pred_fallthru
      _
    %v53 = vld [vmem:[#allocation7] sm:$0xff]
    %v54 = vld [vmem:[#allocation10] sm:$0x1]
    %v55 = vrot.slane %v53, 4
    %v56 = vmax.f32 %v53, %v55
    %v57 = vrot.slane %v56, 2
    %v58 = vmax.f32 %v56, %v57
    %v59 = vrot.slane %v58, 1
    %v60 = vmax.f32 %v58, %v59
    %v61 = vsub.f32 %v53, %v60
    %v62 = vmul.f32 %v61, 1.442695
    %v63 = vpow.pop %v62
    %v64 = vrot.slane %v63, 4
    %v65 = vadd.f32 %v63, %v64
    %v66 = vrot.slane %v65, 2
    %v67 = vadd.f32 %v65, %v66
    %v68 = vrot.slane %v67, 1
    %v69 = vadd.f32 %v67, %v68
    %v70 = vlog2.pop %v69
    %v71 = vmul.f32 %v70, 0.6931472
    %v72 = vlaneseq
    %v73 = vshrl.u32 %v72, 7
    %v74 = vperm.slane %v54, 0
    %vm75 = vcmp.eq.s32.totalorder %v73, %v74
    %v76 = vsel %vm75, %v61, 0.0
    %v77 = vrot.slane %v76, 4
    %v78 = vadd.f32 %v76, %v77
    %v79 = vrot.slane %v78, 2
    %v80 = vadd.f32 %v78, %v79
    %v81 = vrot.slane %v80, 1
    %v82 = vadd.f32 %v80, %v81
    %vm83 = vcmp.ne.s32.totalorder %v54, 4294967295
    %v84 = vsub.f32 %v71, %v82
    %v85 = vsel %vm83, %v84, 0.0
    %vm86 = vcmp.eq.f32.partialorder %v53, %v60
    %v87 = vsel %vm86, %v73, 8
    %v88 = vrot.slane %v87, 4
    %vm89 = vcmp.lt.s32.totalorder %v87, %v88
    %v90 = vsel %vm89, %v87, %v88
    %v91 = vrot.slane %v90, 2
    %vm92 = vcmp.lt.s32.totalorder %v90, %v91
    %v93 = vsel %vm92, %v90, %v91
    %v94 = vrot.slane %v93, 1
    %vm95 = vcmp.lt.s32.totalorder %v93, %v94
    %v96 = vsel %vm95, %v93, %v94
    %97 = vst [vmem:[#allocation12] sm:$0x1] %v96
    %vm98 = vcmp.eq.s32.totalorder %v96, %v54
    %vm99 = vmand %vm83, %vm98
    %v100 = vsel %vm99, 1.0, 0.0
    %vm101 = vcmp.gt.s32.totalorder %v96, 0
    %vm102 = vmand %vm83, %vm101
    %vm103 = vcmp.eq.s32.totalorder %v54, 0
    %vm104 = vmand %vm102, %vm103
    %v105 = vsel %vm104, 1.0, 0.0
    %vm106 = vcmp.eq.s32.totalorder %v96, 0
    %vm107 = vmand %vm83, %vm106
    %vm108 = vcmp.gt.s32.totalorder %v54, 0
    %vm109 = vmand %vm107, %vm108
    %v110 = vsel %vm109, 1.0, 0.0
    %v111 = vld [vmem:[#allocation2] sm:$0x1]
    %v112 = vadd.f32 %v111, %v85
    %113 = vst [vmem:[#allocation2] sm:$0x1] %v112
    %v114 = vld [vmem:[#allocation3] sm:$0x1]
    %v115 = vsel %vm83, 1, 0
    %v116 = vcvt.s32.f32 %v115
    %v117 = vadd.f32 %v114, %v116
    %118 = vst [vmem:[#allocation3] sm:$0x1] %v117
    %v119 = vld [vmem:[#allocation4] sm:$0x1]
    %v120 = vadd.f32 %v119, %v100
    %121 = vst [vmem:[#allocation4] sm:$0x1] %v120
    %v122 = vld [vmem:[#allocation5] sm:$0x1]
    %v123 = vadd.f32 %v122, %v105
    %124 = vst [vmem:[#allocation5] sm:$0x1] %v123
    %v125 = vld [vmem:[#allocation6] sm:$0x1]
    %v126 = vadd.f32 %v125, %v110
    %127 = vst [vmem:[#allocation6] sm:$0x1] %v126
    // Predicated region
    $region22: #{tpu_custom_call.1} parent=1 // pred_check
      %p128 = pneg %p43
    $region23: #{tpu_custom_call.1} parent=1 // pred_check_branch
      %130 = sbr.rel (%p128) target = $region25
    $region24: #{tpu_custom_call.1} parent=1 // pred_region
      %v131 = vld [vmem:[#allocation2] sm:$0x1]
      %vm132 = vcmask 1040384
      %v133 = vsel %vm132, %v131, 0.0
      %134 = vadd.xlane.f32.xlu0 %v133
      %v135 = vpop.xlane.xlu0 %134
      %136 = vst [vmem:[#allocation13] sm:$0x1] %v135
      %v137 = vld [vmem:[#allocation3] sm:$0x1]
      %v138 = vsel %vm132, %v137, 0.0
      %139 = vadd.xlane.f32.xlu0 %v138
      %v140 = vpop.xlane.xlu0 %139
      %141 = vst [vmem:[#allocation13 + $0x1] sm:$0x1] %v140
      %v142 = vld [vmem:[#allocation4] sm:$0x1]
      %v143 = vsel %vm132, %v142, 0.0
      %144 = vadd.xlane.f32.xlu0 %v143
      %v145 = vpop.xlane.xlu0 %144
      %146 = vst [vmem:[#allocation13 + $0x2] sm:$0x1] %v145
      %v147 = vld [vmem:[#allocation5] sm:$0x1]
      %v148 = vsel %vm132, %v147, 0.0
      %149 = vadd.xlane.f32.xlu0 %v148
      %v150 = vpop.xlane.xlu0 %149
      %151 = vst [vmem:[#allocation13 + $0x3] sm:$0x1] %v150
      %v152 = vld [vmem:[#allocation6] sm:$0x1]
      %v153 = vsel %vm132, %v152, 0.0
      %154 = vadd.xlane.f32.xlu0 %v153
      %v155 = vpop.xlane.xlu0 %154
      %156 = vst [vmem:[#allocation13 + $0x4] sm:$0x1] %v155
    $region25: #{tpu_custom_call.1} parent=1 // pred_fallthru
      _
    // Predicated region
    $region26: #{tpu_custom_call.1} parent=1 // pred_check
      _
    $region27: #{tpu_custom_call.1} parent=1 // pred_check_branch
      %158 = sbr.rel (0) target = $region29
    $region28: #{tpu_custom_call.1} parent=1 // pred_region
      %160 = vsyncadd [#allocation9], 0
      %s162 = sshll.u32 [#allocation12], 4
      %s163 = int_to_ptr.vmem [resolvable:$true] %s162
      %s164 = sshll.u32 %s2, 4
      %s165 = int_to_ptr.hbm [resolvable:$true] %s164
      %167 = dma.vmem_to_hbm [thread:$0]  %s163, 16, %s165, [#allocation9]
    $region29: #{tpu_custom_call.1} parent=1 // pred_fallthru
      _
    // Predicated region
    $region30: #{tpu_custom_call.1} parent=1 // pred_check
      _
    $region31: #{tpu_custom_call.1} parent=1 // pred_check_branch
      %169 = sbr.rel (0) target = $region33
    $region32: #{tpu_custom_call.1} parent=1 // pred_region
      %171 = vsyncadd [#allocation14], 0
      %s173 = sshll.u32 [#allocation13], 4
      %s174 = int_to_ptr.vmem [resolvable:$true] %s173
      %s175 = sshll.u32 %s3, 4
      %s176 = int_to_ptr.hbm [resolvable:$true] %s175
      %178 = dma.vmem_to_hbm [thread:$0]  %s174, 128, %s176, [#allocation14]
    $region33: #{tpu_custom_call.1} parent=1 // pred_fallthru
      _
    // Predicated region
    $region34: #{tpu_custom_call.1} parent=1 // pred_check
      _
    $region35: #{tpu_custom_call.1} parent=1 // pred_check_branch
      %180 = sbr.rel (0) target = $region37
    $region36: #{tpu_custom_call.1} parent=1 // pred_region
      %182 = dma.done [#allocation9], 16
    $region37: #{tpu_custom_call.1} parent=1 // pred_fallthru
      _
    // Predicated region
    $region38: #{tpu_custom_call.1} parent=1 // pred_check
      _
    $region39: #{tpu_custom_call.1} parent=1 // pred_check_branch
      %184 = sbr.rel (0) target = $region41
    $region40: #{tpu_custom_call.1} parent=1 // pred_region
      %186 = dma.done [#allocation14], 128
    $region41: #{tpu_custom_call.1} parent=1 // pred_fallthru
      _
    %187 = vsyncpa [#allocation8], 1
    %188 = vsyncpa [#allocation11], 1
    %189 = vsyncpa [#allocation9], 1
    %190 = vsyncpa [#allocation14], 1

</llo_original>
